<compile_context>
chip_gen: v6e
topology: v6e:2x2x1
jax: 0.10.0
libtpu: 0.0.40
codegen_flags: <defaults>
</compile_context>

<pallas_src>
import math

import jax
import jax.numpy as jnp
from jax.experimental import pallas as pl
from jax.experimental.pallas import tpu as pltpu

LANE = 128


def _round_up(x, m):
    return ((x + m - 1) // m) * m


def _cdiv(a, b):
    return -(-a // b)


def _choose_tile_b(batch):
    """Batch-tile heuristic.

    Goals: big tiles (<= 1024 rows) for HBM-roofline efficiency, >= 2 grid
    steps when the batch is large enough (so dimension_semantics=("parallel",)
    can split work across v7x's two TensorCores), 256-row alignment when it
    does not inflate padding (v6e/v7x MXU M-pushes; also a multiple of v5e's
    128), and bounded zero-padding waste.  Always a multiple of 8 (sublanes).
    """
    b8 = _round_up(batch, 8)
    if b8 <= 256:
        return b8                              # one small tile; splitting loses
    n_tiles = max(2, _cdiv(b8, 1024))
    tile = _cdiv(b8, n_tiles)
    for align in (256, 128, 8):
        t = _round_up(tile, align)
        waste = _round_up(batch, t) - batch
        if waste * 8 <= batch or align == 8:   # keep padding waste <= ~12.5%
            return t
    return _round_up(tile, 8)


def mlp_kernel(x_ref, w1_ref, b1_ref, w2_ref, b2_ref, w3_ref, b3_ref, o_ref):
    """One batch tile of the whole MLP; weights/biases VMEM-resident.

    x:  [TB, IS]   f32 (cast to bf16 here)   w1: [IS, 256]  bf16   b1: [1, 256] f32
    w2: [256, 64]  bf16                      b2: [1, 64]    f32
    w3: [64, NCP]  bf16                      b3: [1, NCP]   f32
    o:  [TB, NCP]  bf16  (128-lane-dense padded logits; sliced in the wrapper)
    """
    x = x_ref[...].astype(w1_ref.dtype)

    h1 = jnp.dot(x, w1_ref[...], preferred_element_type=jnp.float32) + b1_ref[...]
    h1 = jnp.maximum(h1, 0.0)

    h2 = jnp.dot(h1.astype(w2_ref.dtype), w2_ref[...],
                 preferred_element_type=jnp.float32) + b2_ref[...]
    h2 = jnp.maximum(h2, 0.0)

    out = jnp.dot(h2.astype(w3_ref.dtype), w3_ref[...],
                  preferred_element_type=jnp.float32) + b3_ref[...]
    o_ref[...] = out.astype(o_ref.dtype)


def _prepare_params(params, nc_p, compute_dtype):
    """Weights -> bf16, biases stay f32.  Only the class dim is zero-padded to
    128 lanes (so the output store is a full, unmasked vst); padded w3 columns
    and b3 entries are exactly zero, so the padded logits are inert."""
    w1, b1, w2, b2, w3, b3 = params
    h2_dim, nc = w3.shape
    w3p = jnp.zeros((h2_dim, nc_p), jnp.float32).at[:, :nc].set(w3)
    b3p = jnp.zeros((1, nc_p), jnp.float32).at[:, :nc].set(b3)
    return (w1.astype(compute_dtype), b1.astype(jnp.float32),
            w2.astype(compute_dtype), b2.astype(jnp.float32),
            w3p.astype(compute_dtype), b3p.astype(jnp.float32))


@jax.jit
def image_classification_forward(x_nchw, params):
    """x_nchw: [B, C, H, W] float32.  Matches torch's x.reshape(-1, W*H):
    returns logits [B*C, num_classifications] (for C==1 that is [B, nc])."""
    w1, b1, w2, b2, w3, b3 = params
    image_size, h1_dim = w1.shape          # (H*W, 256)
    h2_dim = w2.shape[1]                   # 64
    nc = w3.shape[1]                       # num_classifications

    compute_dtype = jnp.bfloat16
    nc_p = _round_up(nc, LANE)

    # Flatten exactly like the torch module (contiguous => free).  The f32
    # activations go to the kernel untouched; the bf16 cast happens in VMEM.
    x_flat = x_nchw.reshape(-1, image_size)
    x_flat = x_flat.astype(jnp.float32)
    B = x_flat.shape[0]

    tile_b = _choose_tile_b(B)
    b_pad = _round_up(B, tile_b)
    grid = (b_pad // tile_b,)

    if b_pad != B:
        x_flat = jnp.pad(x_flat, ((0, b_pad - B), (0, 0)))

    w1p, b1p, w2p, b2p, w3p, b3p = _prepare_params(params, nc_p, compute_dtype)

    flops = 2 * b_pad * (image_size * h1_dim + h1_dim * h2_dim + h2_dim * nc_p)
    bytes_accessed = (
        b_pad * image_size * 4                                          # x (f32 in)
        + b_pad * nc_p * 2                                              # out (bf16)
        + (image_size * h1_dim + h1_dim * h2_dim + h2_dim * nc_p) * 2   # weights bf16
        + (h1_dim + h2_dim + nc_p) * 4)                                 # biases f32

    out_padded = pl.pallas_call(
        mlp_kernel,
        out_shape=jax.ShapeDtypeStruct((b_pad, nc_p), compute_dtype),
        grid=grid,
        in_specs=[
            # If a profile ever shows exposed DMA wait on the x stream, add
            # pipeline_mode=pl.Buffered(3) here (cheap insurance, not needed
            # at 512-1024-row tiles).
            pl.BlockSpec((tile_b, image_size), lambda i: (i, 0)),   # x tile (f32)
            pl.BlockSpec((image_size, h1_dim), lambda i: (0, 0)),   # w1 resident
            pl.BlockSpec((1, h1_dim), lambda i: (0, 0)),            # b1 resident
            pl.BlockSpec((h1_dim, h2_dim), lambda i: (0, 0)),       # w2 resident
            pl.BlockSpec((1, h2_dim), lambda i: (0, 0)),            # b2 resident
            pl.BlockSpec((h2_dim, nc_p), lambda i: (0, 0)),         # w3 resident
            pl.BlockSpec((1, nc_p), lambda i: (0, 0)),              # b3 resident
        ],
        out_specs=pl.BlockSpec((tile_b, nc_p), lambda i: (i, 0)),
        compiler_params=pltpu.CompilerParams(
            dimension_semantics=("parallel",)),
        cost_estimate=pl.CostEstimate(
            flops=flops, transcendentals=0, bytes_accessed=bytes_accessed),
    )(x_flat, w1p, b1p, w2p, b2p, w3p, b3p)

    # Drop batch padding and the fake padded classes; return f32 logits.
    return out_padded[:B, :nc].astype(jnp.float32)


def init_params(key, image_size, num_classifications):
    """Deterministic init mimicking torch.nn.Linear (uniform +-1/sqrt(fan_in)).

    Weights stored as (in_features, out_features) — transposed vs PyTorch's
    (out, in) — so the kernel computes y = x @ W + b.  Biases are (1, out).
    """
    dims = [(image_size, 256), (256, 64), (64, num_classifications)]
    params = []
    for (fan_in, fan_out) in dims:
        key, kw, kb = jax.random.split(key, 3)
        bound = 1.0 / math.sqrt(fan_in)
        w = jax.random.uniform(kw, (fan_in, fan_out), jnp.float32, -bound, bound)
        b = jax.random.uniform(kb, (1, fan_out), jnp.float32, -bound, bound)
        params += [w, b]
    return tuple(params)


def reference_forward(x_nchw, params, compute_dtype=jnp.bfloat16):
    """Plain-JAX reference with the same bf16-operand / f32-accumulate recipe."""
    w1, b1, w2, b2, w3, b3 = params
    image_size = w1.shape[0]
    x = x_nchw.reshape(-1, image_size).astype(compute_dtype)
    h1 = jnp.maximum(
        jnp.dot(x, w1.astype(compute_dtype),
                preferred_element_type=jnp.float32) + b1, 0.0)
    h2 = jnp.maximum(
        jnp.dot(h1.astype(compute_dtype), w2.astype(compute_dtype),
                preferred_element_type=jnp.float32) + b2, 0.0)
    return jnp.dot(h2.astype(compute_dtype), w3.astype(compute_dtype),
                   preferred_element_type=jnp.float32) + b3


if __name__ == "__main__":
    image_width, image_height = 16, 16
    num_classifications = 10
    batch = 2

    key = jax.random.PRNGKey(0)
    key, kx = jax.random.split(key)

    # NCHW input, C=1 (the module's reshape(-1, W*H) implies single-channel).
    x = jax.random.normal(kx, (batch, 1, image_height, image_width), jnp.float32)
    params = init_params(key, image_width * image_height, num_classifications)

    out = image_classification_forward(x, params)
    out = jax.block_until_ready(out)

    ref = reference_forward(x, params)
    assert out.shape == (batch, num_classifications), out.shape
    assert jnp.allclose(out, ref, atol=1e-2, rtol=1e-2), jnp.max(jnp.abs(out - ref))

    print("KERNEL_OK")
</pallas_src>

<mosaic_0001>
module attributes {stable_mosaic.version = 11 : i64} {
  func.func @mlp_kernel(%arg0: i32, %arg1: memref<8x256xf32, #tpu.memory_space<vmem>>, %arg2: memref<256x256xbf16, #tpu.memory_space<vmem>>, %arg3: memref<1x256xf32, #tpu.memory_space<vmem>>, %arg4: memref<256x64xbf16, #tpu.memory_space<vmem>>, %arg5: memref<1x64xf32, #tpu.memory_space<vmem>>, %arg6: memref<64x128xbf16, #tpu.memory_space<vmem>>, %arg7: memref<1x128xf32, #tpu.memory_space<vmem>>, %arg8: memref<8x128xbf16, #tpu.memory_space<vmem>>) attributes {dimension_semantics = [#tpu.dimension_semantics<parallel>], iteration_bounds = array<i64: 1>, scalar_prefetch = 0 : i64, scratch_operands = 0 : i64, tpu.core_type = #tpu.core_type<tc>, window_params = [{transform_indices = @transform_0, window_bounds = array<i64: 8, 256>}, {pipeline_mode = #tpu.pipeline_mode<synchronous>, transform_indices = @transform_1, window_bounds = array<i64: 256, 256>}, {pipeline_mode = #tpu.pipeline_mode<synchronous>, transform_indices = @transform_2, window_bounds = array<i64: 1, 256>}, {pipeline_mode = #tpu.pipeline_mode<synchronous>, transform_indices = @transform_3, window_bounds = array<i64: 256, 64>}, {pipeline_mode = #tpu.pipeline_mode<synchronous>, transform_indices = @transform_4, window_bounds = array<i64: 1, 64>}, {pipeline_mode = #tpu.pipeline_mode<synchronous>, transform_indices = @transform_5, window_bounds = array<i64: 64, 128>}, {pipeline_mode = #tpu.pipeline_mode<synchronous>, transform_indices = @transform_6, window_bounds = array<i64: 1, 128>}, {transform_indices = @transform_7, window_bounds = array<i64: 8, 128>}]} {
    %c0 = arith.constant 0 : index
    %c0_0 = arith.constant 0 : index
    %0 = vector.load %arg1[%c0, %c0_0] : memref<8x256xf32, #tpu.memory_space<vmem>>, vector<8x256xf32>
    %1 = arith.truncf %0 : vector<8x256xf32> to vector<8x256xbf16>
    %c0_1 = arith.constant 0 : index
    %c0_2 = arith.constant 0 : index
    %2 = vector.load %arg2[%c0_1, %c0_2] : memref<256x256xbf16, #tpu.memory_space<vmem>>, vector<256x256xbf16>
    %cst = arith.constant dense<0.000000e+00> : vector<8x256xf32>
    %3 = tpu.matmul %1, %2, %cst {dimension_numbers = #tpu.dot_dimension_numbers<[1], [0], [0], [1], [0, 0, 1, 1], [], []>} : vector<8x256xbf16>, vector<256x256xbf16>, vector<8x256xf32> -> vector<8x256xf32>
    %c0_3 = arith.constant 0 : index
    %c0_4 = arith.constant 0 : index
    %4 = vector.load %arg3[%c0_3, %c0_4] : memref<1x256xf32, #tpu.memory_space<vmem>>, vector<1x256xf32>
    %5 = vector.broadcast %4 : vector<1x256xf32> to vector<8x256xf32>
    %6 = arith.addf %3, %5 : vector<8x256xf32>
    %cst_5 = arith.constant 0.000000e+00 : f32
    %7 = vector.broadcast %cst_5 : f32 to vector<8x256xf32>
    %8 = arith.maximumf %6, %7 : vector<8x256xf32>
    %9 = arith.truncf %8 : vector<8x256xf32> to vector<8x256xbf16>
    %c0_6 = arith.constant 0 : index
    %c0_7 = arith.constant 0 : index
    %10 = vector.load %arg4[%c0_6, %c0_7] : memref<256x64xbf16, #tpu.memory_space<vmem>>, vector<256x64xbf16>
    %cst_8 = arith.constant dense<0.000000e+00> : vector<8x64xf32>
    %11 = tpu.matmul %9, %10, %cst_8 {dimension_numbers = #tpu.dot_dimension_numbers<[1], [0], [0], [1], [0, 0, 1, 1], [], []>} : vector<8x256xbf16>, vector<256x64xbf16>, vector<8x64xf32> -> vector<8x64xf32>
    %c0_9 = arith.constant 0 : index
    %c0_10 = arith.constant 0 : index
    %12 = vector.load %arg5[%c0_9, %c0_10] : memref<1x64xf32, #tpu.memory_space<vmem>>, vector<1x64xf32>
    %13 = vector.broadcast %12 : vector<1x64xf32> to vector<8x64xf32>
    %14 = arith.addf %11, %13 : vector<8x64xf32>
    %cst_11 = arith.constant 0.000000e+00 : f32
    %15 = vector.broadcast %cst_11 : f32 to vector<8x64xf32>
    %16 = arith.maximumf %14, %15 : vector<8x64xf32>
    %17 = arith.truncf %16 : vector<8x64xf32> to vector<8x64xbf16>
    %c0_12 = arith.constant 0 : index
    %c0_13 = arith.constant 0 : index
    %18 = vector.load %arg6[%c0_12, %c0_13] : memref<64x128xbf16, #tpu.memory_space<vmem>>, vector<64x128xbf16>
    %cst_14 = arith.constant dense<0.000000e+00> : vector<8x128xf32>
    %19 = tpu.matmul %17, %18, %cst_14 {dimension_numbers = #tpu.dot_dimension_numbers<[1], [0], [0], [1], [0, 0, 1, 1], [], []>} : vector<8x64xbf16>, vector<64x128xbf16>, vector<8x128xf32> -> vector<8x128xf32>
    %c0_15 = arith.constant 0 : index
    %c0_16 = arith.constant 0 : index
    %20 = vector.load %arg7[%c0_15, %c0_16] : memref<1x128xf32, #tpu.memory_space<vmem>>, vector<1x128xf32>
    %21 = vector.broadcast %20 : vector<1x128xf32> to vector<8x128xf32>
    %22 = arith.addf %19, %21 : vector<8x128xf32>
    %23 = arith.truncf %22 : vector<8x128xf32> to vector<8x128xbf16>
    %c0_17 = arith.constant 0 : index
    %c0_18 = arith.constant 0 : index
    %24 = vector.load %arg8[%c0_17, %c0_18] : memref<8x128xbf16, #tpu.memory_space<vmem>>, vector<8x128xbf16>
    tpu.vector_store %arg8[%c0_17, %c0_18], %23 {strides = array<i32>} : memref<8x128xbf16, #tpu.memory_space<vmem>>, vector<8x128xbf16>,
    return
  }
  func.func @transform_0(%arg0: i32) -> (i32, i32) {
    %c0_i32 = arith.constant 0 : i32
    %c0_i32_0 = arith.constant 0 : i32
    return %arg0, %c0_i32 : i32, i32
  }
  func.func @transform_1(%arg0: i32) -> (i32, i32) {
    %c0_i32 = arith.constant 0 : i32
    %c0_i32_0 = arith.constant 0 : i32
    %c0_i32_1 = arith.constant 0 : i32
    return %c0_i32, %c0_i32_0 : i32, i32
  }
  func.func @transform_2(%arg0: i32) -> (i32, i32) {
    %c0_i32 = arith.constant 0 : i32
    %c0_i32_0 = arith.constant 0 : i32
    %c0_i32_1 = arith.constant 0 : i32
    return %c0_i32, %c0_i32_0 : i32, i32
  }
  func.func @transform_3(%arg0: i32) -> (i32, i32) {
    %c0_i32 = arith.constant 0 : i32
    %c0_i32_0 = arith.constant 0 : i32
    %c0_i32_1 = arith.constant 0 : i32
    return %c0_i32, %c0_i32_0 : i32, i32
  }
  func.func @transform_4(%arg0: i32) -> (i32, i32) {
    %c0_i32 = arith.constant 0 : i32
    %c0_i32_0 = arith.constant 0 : i32
    %c0_i32_1 = arith.constant 0 : i32
    return %c0_i32, %c0_i32_0 : i32, i32
  }
  func.func @transform_5(%arg0: i32) -> (i32, i32) {
    %c0_i32 = arith.constant 0 : i32
    %c0_i32_0 = arith.constant 0 : i32
    %c0_i32_1 = arith.constant 0 : i32
    return %c0_i32, %c0_i32_0 : i32, i32
  }
  func.func @transform_6(%arg0: i32) -> (i32, i32) {
    %c0_i32 = arith.constant 0 : i32
    %c0_i32_0 = arith.constant 0 : i32
    %c0_i32_1 = arith.constant 0 : i32
    return %c0_i32, %c0_i32_0 : i32, i32
  }
  func.func @transform_7(%arg0: i32) -> (i32, i32) {
    %c0_i32 = arith.constant 0 : i32
    %c0_i32_0 = arith.constant 0 : i32
    return %arg0, %c0_i32 : i32, i32
  }
}

</mosaic_0001>

<llo_original>
// kernel: image_classification_forward.1
$region0: #{image_classification_forward.1}
  #allocation0 [shape = 'u32[]', space=smem, size = 0x4, offset = 0x4, fixed_abs, tag = 'smem constant byte address 0x4 - core index']
  #allocation1 [shape = 'u32[144,128]{1,0:T(1,128)}', space=vmem, size = 0x12000, scoped, tag = 'internal scratch']
  %s0 = inlined_call_operand.vmem [shape: f32[8,256], index: 0, kind: input, shape index: {}]
  %s1 = inlined_call_operand.vmem [shape: bf16[256,256], index: 1, kind: input, shape index: {}]
  %s2 = inlined_call_operand.vmem [shape: f32[1,256], index: 2, kind: input, shape index: {}]
  %s3 = inlined_call_operand.vmem [shape: bf16[256,64], index: 3, kind: input, shape index: {}]
  %s4 = inlined_call_operand.vmem [shape: f32[1,64], index: 4, kind: input, shape index: {}]
  %s5 = inlined_call_operand.vmem [shape: bf16[64,128], index: 5, kind: input, shape index: {}]
  %s6 = inlined_call_operand.vmem [shape: f32[1,128], index: 6, kind: input, shape index: {}]
  %s7 = inlined_call_operand.vmem [shape: bf16[8,128], index: 7, kind: output, shape index: {}]
  %s8 = sld [smem:[#allocation0]]
  $region38: #{image_classification_forward.1} parent=0
    _
  %s10 = ssub.s32 1, %s8
  %s11 = scalar_select 0, %s10, %s8
  // Predicated region
  $region2: #{image_classification_forward.1} parent=0 // pred_check
    _
  $region3: #{image_classification_forward.1} parent=0 // pred_check_branch
    %13 = sbr.rel (0) target = $region5
  $region4: #{image_classification_forward.1} parent=0 // pred_region
    _
  $region5: #{image_classification_forward.1} parent=0 // pred_fallthru
    _
  // Predicated region
  $region6: #{image_classification_forward.1} parent=0 // pred_check
    _
  $region7: #{image_classification_forward.1} parent=0 // pred_check_branch
    %15 = sbr.rel (0) target = $region9
  $region8: #{image_classification_forward.1} parent=0 // pred_region
    _
  $region9: #{image_classification_forward.1} parent=0 // pred_fallthru
    _
  // Predicated region
  $region10: #{image_classification_forward.1} parent=0 // pred_check
    _
  $region11: #{image_classification_forward.1} parent=0 // pred_check_branch
    %17 = sbr.rel (0) target = $region13
  $region12: #{image_classification_forward.1} parent=0 // pred_region
    _
  $region13: #{image_classification_forward.1} parent=0 // pred_fallthru
    _
  // Predicated region
  $region14: #{image_classification_forward.1} parent=0 // pred_check
    _
  $region15: #{image_classification_forward.1} parent=0 // pred_check_branch
    %19 = sbr.rel (0) target = $region17
  $region16: #{image_classification_forward.1} parent=0 // pred_region
    _
  $region17: #{image_classification_forward.1} parent=0 // pred_fallthru
    _
  // Predicated region
  $region18: #{image_classification_forward.1} parent=0 // pred_check
    _
  $region19: #{image_classification_forward.1} parent=0 // pred_check_branch
    %21 = sbr.rel (0) target = $region21
  $region20: #{image_classification_forward.1} parent=0 // pred_region
    _
  $region21: #{image_classification_forward.1} parent=0 // pred_fallthru
    _
  // Predicated region
  $region22: #{image_classification_forward.1} parent=0 // pred_check
    _
  $region23: #{image_classification_forward.1} parent=0 // pred_check_branch
    %23 = sbr.rel (0) target = $region25
  $region24: #{image_classification_forward.1} parent=0 // pred_region
    _
  $region25: #{image_classification_forward.1} parent=0 // pred_fallthru
    _
  // Predicated region
  $region26: #{image_classification_forward.1} parent=0 // pred_check
    _
  $region27: #{image_classification_forward.1} parent=0 // pred_check_branch
    %25 = sbr.rel (0) target = $region29
  $region28: #{image_classification_forward.1} parent=0 // pred_region
    _
  $region29: #{image_classification_forward.1} parent=0 // pred_fallthru
    _
  %v27 = vld [vmem:[%s0] sm:$0xff]
  %v28 = vld [vmem:[%s0 + $0x8] sm:$0xff]
  %v29 = vpack.c.bf16 %v27, %v27
  %v30 = vpack.c.bf16 %v28, %v28
  %v31 = vld [vmem:[%s1] sm:$0xff]
  %v32 = vld [vmem:[%s1 + $0x8] sm:$0xff]
  %v33 = vld [vmem:[%s1 + $0x10] sm:$0xff]
  %v34 = vld [vmem:[%s1 + $0x18] sm:$0xff]
  %v35 = vld [vmem:[%s1 + $0x20] sm:$0xff]
  %v36 = vld [vmem:[%s1 + $0x28] sm:$0xff]
  %v37 = vld [vmem:[%s1 + $0x30] sm:$0xff]
  %v38 = vld [vmem:[%s1 + $0x38] sm:$0xff]
  %v39 = vld [vmem:[%s1 + $0x40] sm:$0xff]
  %v40 = vld [vmem:[%s1 + $0x48] sm:$0xff]
  %v41 = vld [vmem:[%s1 + $0x50] sm:$0xff]
  %v42 = vld [vmem:[%s1 + $0x58] sm:$0xff]
  %v43 = vld [vmem:[%s1 + $0x60] sm:$0xff]
  %v44 = vld [vmem:[%s1 + $0x68] sm:$0xff]
  %v45 = vld [vmem:[%s1 + $0x70] sm:$0xff]
  %v46 = vld [vmem:[%s1 + $0x78] sm:$0xff]
  %v47 = vld [vmem:[%s1 + $0x80] sm:$0xff]
  %v48 = vld [vmem:[%s1 + $0x88] sm:$0xff]
  %v49 = vld [vmem:[%s1 + $0x90] sm:$0xff]
  %v50 = vld [vmem:[%s1 + $0x98] sm:$0xff]
  %v51 = vld [vmem:[%s1 + $0xa0] sm:$0xff]
  %v52 = vld [vmem:[%s1 + $0xa8] sm:$0xff]
  %v53 = vld [vmem:[%s1 + $0xb0] sm:$0xff]
  %v54 = vld [vmem:[%s1 + $0xb8] sm:$0xff]
  %v55 = vld [vmem:[%s1 + $0xc0] sm:$0xff]
  %v56 = vld [vmem:[%s1 + $0xc8] sm:$0xff]
  %v57 = vld [vmem:[%s1 + $0xd0] sm:$0xff]
  %v58 = vld [vmem:[%s1 + $0xd8] sm:$0xff]
  %v59 = vld [vmem:[%s1 + $0xe0] sm:$0xff]
  %v60 = vld [vmem:[%s1 + $0xe8] sm:$0xff]
  %v61 = vld [vmem:[%s1 + $0xf0] sm:$0xff]
  %v62 = vld [vmem:[%s1 + $0xf8] sm:$0xff]
  %v63 = vld [vmem:[%s2] sm:$0x3]
  %v65 = vlaneseq
  %v66 = vshrl.u32 %v65, 7
  %v67 = vsub.s32 0, %v66
  %v68 = vrot.slane %v63, %v67
  %v69 = vlaneseq
  %v70 = vshrl.u32 %v69, 7
  %v71 = vsub.s32 1, %v70
  %v72 = vrot.slane %v63, %v71
  %v107 = vunpack.c.l.b16 %v31
  %v108 = vunpack.c.h.b16 %v31
  %v109 = vunpack.c.l.b16 %v32
  %v110 = vunpack.c.h.b16 %v32
  %v111 = vunpack.c.l.b16 %v33
  %v112 = vunpack.c.h.b16 %v33
  %v113 = vunpack.c.l.b16 %v34
  %v114 = vunpack.c.h.b16 %v34
  %v115 = vunpack.c.l.b16 %v35
  %v116 = vunpack.c.h.b16 %v35
  %v117 = vunpack.c.l.b16 %v36
  %v118 = vunpack.c.h.b16 %v36
  %v119 = vunpack.c.l.b16 %v37
  %v120 = vunpack.c.h.b16 %v37
  %v121 = vunpack.c.l.b16 %v38
  %v122 = vunpack.c.h.b16 %v38
  %v123 = vunpack.c.l.b16 %v39
  %v124 = vunpack.c.h.b16 %v39
  %v125 = vunpack.c.l.b16 %v40
  %v126 = vunpack.c.h.b16 %v40
  %v127 = vunpack.c.l.b16 %v41
  %v128 = vunpack.c.h.b16 %v41
  %v129 = vunpack.c.l.b16 %v42
  %v130 = vunpack.c.h.b16 %v42
  %v131 = vunpack.c.l.b16 %v43
  %v132 = vunpack.c.h.b16 %v43
  %v133 = vunpack.c.l.b16 %v44
  %v134 = vunpack.c.h.b16 %v44
  %v135 = vunpack.c.l.b16 %v45
  %v136 = vunpack.c.h.b16 %v45
  %v137 = vunpack.c.l.b16 %v46
  %v138 = vunpack.c.h.b16 %v46
  %v139 = vunpack.c.l.b16 %v47
  %v140 = vunpack.c.h.b16 %v47
  %v141 = vunpack.c.l.b16 %v48
  %v142 = vunpack.c.h.b16 %v48
  %v143 = vunpack.c.l.b16 %v49
  %v144 = vunpack.c.h.b16 %v49
  %v145 = vunpack.c.l.b16 %v50
  %v146 = vunpack.c.h.b16 %v50
  %v147 = vunpack.c.l.b16 %v51
  %v148 = vunpack.c.h.b16 %v51
  %v149 = vunpack.c.l.b16 %v52
  %v150 = vunpack.c.h.b16 %v52
  %v151 = vunpack.c.l.b16 %v53
  %v152 = vunpack.c.h.b16 %v53
  %v153 = vunpack.c.l.b16 %v54
  %v154 = vunpack.c.h.b16 %v54
  %v155 = vunpack.c.l.b16 %v55
  %v156 = vunpack.c.h.b16 %v55
  %v157 = vunpack.c.l.b16 %v56
  %v158 = vunpack.c.h.b16 %v56
  %v159 = vunpack.c.l.b16 %v57
  %v160 = vunpack.c.h.b16 %v57
  %v161 = vunpack.c.l.b16 %v58
  %v162 = vunpack.c.h.b16 %v58
  %v163 = vunpack.c.l.b16 %v59
  %v164 = vunpack.c.h.b16 %v59
  %v165 = vunpack.c.l.b16 %v60
  %v166 = vunpack.c.h.b16 %v60
  %v167 = vunpack.c.l.b16 %v61
  %v168 = vunpack.c.h.b16 %v61
  %v169 = vunpack.c.l.b16 %v62
  %v170 = vunpack.c.h.b16 %v62
  %v171 = vpack.c.b16 %v109, %v107
  %v172 = vpack.c.b16 %v110, %v108
  %v173 = vpack.c.b16 %v113, %v111
  %v174 = vpack.c.b16 %v114, %v112
  %v175 = vpack.c.b16 %v117, %v115
  %v176 = vpack.c.b16 %v118, %v116
  %v177 = vpack.c.b16 %v121, %v119
  %v178 = vpack.c.b16 %v122, %v120
  %v179 = vpack.c.b16 %v125, %v123
  %v180 = vpack.c.b16 %v126, %v124
  %v181 = vpack.c.b16 %v129, %v127
  %v182 = vpack.c.b16 %v130, %v128
  %v183 = vpack.c.b16 %v133, %v131
  %v184 = vpack.c.b16 %v134, %v132
  %v185 = vpack.c.b16 %v137, %v135
  %v186 = vpack.c.b16 %v138, %v136
  %v187 = vpack.c.b16 %v141, %v139
  %v188 = vpack.c.b16 %v142, %v140
  %v189 = vpack.c.b16 %v145, %v143
  %v190 = vpack.c.b16 %v146, %v144
  %v191 = vpack.c.b16 %v149, %v147
  %v192 = vpack.c.b16 %v150, %v148
  %v193 = vpack.c.b16 %v153, %v151
  %v194 = vpack.c.b16 %v154, %v152
  %v195 = vpack.c.b16 %v157, %v155
  %v196 = vpack.c.b16 %v158, %v156
  %v197 = vpack.c.b16 %v161, %v159
  %v198 = vpack.c.b16 %v162, %v160
  %v199 = vpack.c.b16 %v165, %v163
  %v200 = vpack.c.b16 %v166, %v164
  %v201 = vpack.c.b16 %v169, %v167
  %v202 = vpack.c.b16 %v170, %v168
  %235 = vmatprep.subr.bf16.mxu0 %v186
  %236 = vmatpush1.bf16.msra.mxu0 %v185
  %237 = vmatprep.subr.bf16.mxu0 %v184
  %238 = vmatpush1.bf16.msra.mxu0 %v183
  %239 = vmatprep.subr.bf16.mxu0 %v182
  %240 = vmatpush1.bf16.msra.mxu0 %v181
  %241 = vmatprep.subr.bf16.mxu0 %v180
  %242 = vmatpush1.bf16.msra.mxu0 %v179
  %243 = vmatprep.subr.bf16.mxu0 %v178
  %244 = vmatpush1.bf16.msra.mxu0 %v177
  %245 = vmatprep.subr.bf16.mxu0 %v176
  %246 = vmatpush1.bf16.msra.mxu0 %v175
  %247 = vmatprep.subr.bf16.mxu0 %v174
  %248 = vmatpush1.bf16.msra.mxu0 %v173
  %249 = vmatprep.subr.bf16.mxu0 %v172
  %250 = vmatpush1.bf16.msra.mxu0 %v171
  %251 = vmatprep.subr.bf16.mxu0 %v202
  %252 = vmatpush2.bf16.msra.mxu0 %v201
  %253 = vmatprep.subr.bf16.mxu0 %v200
  %254 = vmatpush2.bf16.msra.mxu0 %v199
  %255 = vmatprep.subr.bf16.mxu0 %v198
  %256 = vmatpush2.bf16.msra.mxu0 %v197
  %257 = vmatprep.subr.bf16.mxu0 %v196
  %258 = vmatpush2.bf16.msra.mxu0 %v195
  %259 = vmatprep.subr.bf16.mxu0 %v194
  %260 = vmatpush2.bf16.msra.mxu0 %v193
  %261 = vmatprep.subr.bf16.mxu0 %v192
  %262 = vmatpush2.bf16.msra.mxu0 %v191
  %263 = vmatprep.subr.bf16.mxu0 %v190
  %264 = vmatpush2.bf16.msra.mxu0 %v189
  %265 = vmatprep.subr.bf16.mxu0 %v188
  %266 = vmatpush2.bf16.msra.mxu0 %v187
  %267 = vmatprep.mubr.bf16.mxu0 %v30
  %268 = vmatmul.mubr.bf16.gmra.mxu0 %v29
  %v269 = vpop.f32.mrf.mxu0
  %v270 = vadd.f32 %v68, %v269
  %v271 = vpop.f32.mrf.mxu0
  %v272 = vadd.f32 %v72, %v271
  %v273 = vpop.f32.mrf.mxu0
  %v274 = vpop.f32.mrf.mxu0
  %275 = vdwg.mxu0
  %v276 = vmax.f32 %v270, 0.0
  %v277 = vmax.f32 %v272, 0.0
  %v278 = vpack.c.bf16 %v276, %v276
  %v279 = vpack.c.bf16 %v277, %v277
  %v280 = vld [vmem:[%s3] sm:$0xf]
  %v281 = vld [vmem:[%s3 + $0x4] sm:$0xf]
  %v282 = vld [vmem:[%s3 + $0x8] sm:$0xf]
  %v283 = vld [vmem:[%s3 + $0xc] sm:$0xf]
  %v284 = vld [vmem:[%s3 + $0x10] sm:$0xf]
  %v285 = vld [vmem:[%s3 + $0x14] sm:$0xf]
  %v286 = vld [vmem:[%s3 + $0x18] sm:$0xf]
  %v287 = vld [vmem:[%s3 + $0x1c] sm:$0xf]
  %v288 = vld [vmem:[%s3 + $0x20] sm:$0xf]
  %v289 = vld [vmem:[%s3 + $0x24] sm:$0xf]
  %v290 = vld [vmem:[%s3 + $0x28] sm:$0xf]
  %v291 = vld [vmem:[%s3 + $0x2c] sm:$0xf]
  %v292 = vld [vmem:[%s3 + $0x30] sm:$0xf]
  %v293 = vld [vmem:[%s3 + $0x34] sm:$0xf]
  %v294 = vld [vmem:[%s3 + $0x38] sm:$0xf]
  %v295 = vld [vmem:[%s3 + $0x3c] sm:$0xf]
  %v296 = vld [vmem:[%s3 + $0x40] sm:$0xf]
  %v297 = vld [vmem:[%s3 + $0x44] sm:$0xf]
  %v298 = vld [vmem:[%s3 + $0x48] sm:$0xf]
  %v299 = vld [vmem:[%s3 + $0x4c] sm:$0xf]
  %v300 = vld [vmem:[%s3 + $0x50] sm:$0xf]
  %v301 = vld [vmem:[%s3 + $0x54] sm:$0xf]
  %v302 = vld [vmem:[%s3 + $0x58] sm:$0xf]
  %v303 = vld [vmem:[%s3 + $0x5c] sm:$0xf]
  %v304 = vld [vmem:[%s3 + $0x60] sm:$0xf]
  %v305 = vld [vmem:[%s3 + $0x64] sm:$0xf]
  %v306 = vld [vmem:[%s3 + $0x68] sm:$0xf]
  %v307 = vld [vmem:[%s3 + $0x6c] sm:$0xf]
  %v308 = vld [vmem:[%s3 + $0x70] sm:$0xf]
  %v309 = vld [vmem:[%s3 + $0x74] sm:$0xf]
  %v310 = vld [vmem:[%s3 + $0x78] sm:$0xf]
  %v311 = vld [vmem:[%s3 + $0x7c] sm:$0xf]
  %v312 = vld [vmem:[%s4] sm:$0x1]
  %v314 = vlaneseq
  %v315 = vshrl.u32 %v314, 7
  %v316 = vsub.s32 0, %v315
  %v317 = vrot.slane %v312, %v316
  %v351 = vunpack.c.l.b16 %v280
  %v352 = vunpack.c.l.b16 %v281
  %v353 = vunpack.c.l.b16 %v282
  %v354 = vunpack.c.l.b16 %v283
  %v355 = vunpack.c.l.b16 %v284
  %v356 = vunpack.c.l.b16 %v285
  %v357 = vunpack.c.l.b16 %v286
  %v358 = vunpack.c.l.b16 %v287
  %v359 = vunpack.c.l.b16 %v288
  %v360 = vunpack.c.l.b16 %v289
  %v361 = vunpack.c.l.b16 %v290
  %v362 = vunpack.c.l.b16 %v291
  %v363 = vunpack.c.l.b16 %v292
  %v364 = vunpack.c.l.b16 %v293
  %v365 = vunpack.c.l.b16 %v294
  %v366 = vunpack.c.l.b16 %v295
  %v367 = vunpack.c.l.b16 %v296
  %v368 = vunpack.c.l.b16 %v297
  %v369 = vunpack.c.l.b16 %v298
  %v370 = vunpack.c.l.b16 %v299
  %v371 = vunpack.c.l.b16 %v300
  %v372 = vunpack.c.l.b16 %v301
  %v373 = vunpack.c.l.b16 %v302
  %v374 = vunpack.c.l.b16 %v303
  %v375 = vunpack.c.l.b16 %v304
  %v376 = vunpack.c.l.b16 %v305
  %v377 = vunpack.c.l.b16 %v306
  %v378 = vunpack.c.l.b16 %v307
  %v379 = vunpack.c.l.b16 %v308
  %v380 = vunpack.c.l.b16 %v309
  %v381 = vunpack.c.l.b16 %v310
  %v382 = vunpack.c.l.b16 %v311
  %v383 = vpack.c.b16 %v352, %v351
  %v384 = vpack.c.b16 %v354, %v353
  %v385 = vpack.c.b16 %v356, %v355
  %v386 = vpack.c.b16 %v358, %v357
  %v387 = vpack.c.b16 %v360, %v359
  %v388 = vpack.c.b16 %v362, %v361
  %v389 = vpack.c.b16 %v364, %v363
  %v390 = vpack.c.b16 %v366, %v365
  %v391 = vpack.c.b16 %v368, %v367
  %v392 = vpack.c.b16 %v370, %v369
  %v393 = vpack.c.b16 %v372, %v371
  %v394 = vpack.c.b16 %v374, %v373
  %v395 = vpack.c.b16 %v376, %v375
  %v396 = vpack.c.b16 %v378, %v377
  %v397 = vpack.c.b16 %v380, %v379
  %v398 = vpack.c.b16 %v382, %v381
  %415 = vmatprep.subr.bf16.mxu0 0
  %416 = vmatpush1.bf16.msra.mxu0 %v390
  %417 = vmatprep.subr.bf16.mxu0 0
  %418 = vmatpush1.bf16.msra.mxu0 %v389
  %419 = vmatprep.subr.bf16.mxu0 0
  %420 = vmatpush1.bf16.msra.mxu0 %v388
  %421 = vmatprep.subr.bf16.mxu0 0
  %422 = vmatpush1.bf16.msra.mxu0 %v387
  %423 = vmatprep.subr.bf16.mxu0 0
  %424 = vmatpush1.bf16.msra.mxu0 %v386
  %425 = vmatprep.subr.bf16.mxu0 0
  %426 = vmatpush1.bf16.msra.mxu0 %v385
  %427 = vmatprep.subr.bf16.mxu0 0
  %428 = vmatpush1.bf16.msra.mxu0 %v384
  %429 = vmatprep.subr.bf16.mxu0 0
  %430 = vmatpush1.bf16.msra.mxu0 %v383
  %431 = vmatprep.subr.bf16.mxu0 0
  %432 = vmatpush2.bf16.msra.mxu0 %v398
  %433 = vmatprep.subr.bf16.mxu0 0
  %434 = vmatpush2.bf16.msra.mxu0 %v397
  %435 = vmatprep.subr.bf16.mxu0 0
  %436 = vmatpush2.bf16.msra.mxu0 %v396
  %437 = vmatprep.subr.bf16.mxu0 0
  %438 = vmatpush2.bf16.msra.mxu0 %v395
  %439 = vmatprep.subr.bf16.mxu0 0
  %440 = vmatpush2.bf16.msra.mxu0 %v394
  %441 = vmatprep.subr.bf16.mxu0 0
  %442 = vmatpush2.bf16.msra.mxu0 %v393
  %443 = vmatprep.subr.bf16.mxu0 0
  %444 = vmatpush2.bf16.msra.mxu0 %v392
  %445 = vmatprep.subr.bf16.mxu0 0
  %446 = vmatpush2.bf16.msra.mxu0 %v391
  %447 = vmatprep.mubr.bf16.mxu0 %v279
  %448 = vmatmul.mubr.bf16.gmra.mxu0 %v278
  %v449 = vpop.f32.mrf.mxu0
  %v450 = vadd.f32 %v317, %v449
  %v451 = vpop.f32.mrf.mxu0
  %v452 = vpop.f32.mrf.mxu0
  %v453 = vpop.f32.mrf.mxu0
  %454 = vdwg.mxu0
  %v455 = vmax.f32 %v450, 0.0
  %v456 = vpack.c.bf16 %v455, %v455
  %v457 = vld [vmem:[%s5] sm:$0xf]
  %v458 = vld [vmem:[%s5 + $0x4] sm:$0xf]
  %v459 = vld [vmem:[%s5 + $0x8] sm:$0xf]
  %v460 = vld [vmem:[%s5 + $0xc] sm:$0xf]
  %v461 = vld [vmem:[%s5 + $0x10] sm:$0xf]
  %v462 = vld [vmem:[%s5 + $0x14] sm:$0xf]
  %v463 = vld [vmem:[%s5 + $0x18] sm:$0xf]
  %v464 = vld [vmem:[%s5 + $0x1c] sm:$0xf]
  %v465 = vld [vmem:[%s6] sm:$0x1]
  %v467 = vlaneseq
  %v468 = vshrl.u32 %v467, 7
  %v469 = vsub.s32 0, %v468
  %v470 = vrot.slane %v465, %v469
  %v480 = vunpack.c.l.b16 %v457
  %v481 = vunpack.c.l.b16 %v458
  %v482 = vunpack.c.l.b16 %v459
  %v483 = vunpack.c.l.b16 %v460
  %v484 = vunpack.c.l.b16 %v461
  %v485 = vunpack.c.l.b16 %v462
  %v486 = vunpack.c.l.b16 %v463
  %v487 = vunpack.c.l.b16 %v464
  %v488 = vpack.c.b16 %v481, %v480
  %v489 = vpack.c.b16 %v483, %v482
  %v490 = vpack.c.b16 %v485, %v484
  %v491 = vpack.c.b16 %v487, %v486
  %vm496 = vcmask 523264
  %v498 = vsel %vm496, %v456, 0
  %500 = vmatprep.subr.bf16.mxu0 0
  %501 = vmatpush1.bf16.msra.mxu0 0
  %502 = vmatprep.subr.bf16.mxu0 0
  %503 = vmatpush1.bf16.msra.mxu0 0
  %504 = vmatprep.subr.bf16.mxu0 0
  %505 = vmatpush1.bf16.msra.mxu0 0
  %506 = vmatprep.subr.bf16.mxu0 0
  %507 = vmatpush1.bf16.msra.mxu0 0
  %508 = vmatprep.subr.bf16.mxu0 0
  %509 = vmatpush1.bf16.msra.mxu0 %v491
  %510 = vmatprep.subr.bf16.mxu0 0
  %511 = vmatpush1.bf16.msra.mxu0 %v490
  %512 = vmatprep.subr.bf16.mxu0 0
  %513 = vmatpush1.bf16.msra.mxu0 %v489
  %514 = vmatprep.subr.bf16.mxu0 0
  %515 = vmatpush1.bf16.msra.mxu0 %v488
  %516 = vmatprep.subr.bf16.mxu0 0
  %517 = vmatpush2.bf16.msra.mxu0 0
  %518 = vmatprep.subr.bf16.mxu0 0
  %519 = vmatpush2.bf16.msra.mxu0 0
  %520 = vmatprep.subr.bf16.mxu0 0
  %521 = vmatpush2.bf16.msra.mxu0 0
  %522 = vmatprep.subr.bf16.mxu0 0
  %523 = vmatpush2.bf16.msra.mxu0 0
  %524 = vmatprep.subr.bf16.mxu0 0
  %525 = vmatpush2.bf16.msra.mxu0 0
  %526 = vmatprep.subr.bf16.mxu0 0
  %527 = vmatpush2.bf16.msra.mxu0 0
  %528 = vmatprep.subr.bf16.mxu0 0
  %529 = vmatpush2.bf16.msra.mxu0 0
  %530 = vmatprep.subr.bf16.mxu0 0
  %531 = vmatpush2.bf16.msra.mxu0 0
  %532 = vmatprep.mubr.bf16.mxu0 0
  %533 = vmatmul.mubr.bf16.gmra.mxu0 %v498
  %v534 = vpop.f32.mrf.mxu0
  %v535 = vadd.f32 %v470, %v534
  %v536 = vpop.f32.mrf.mxu0
  %v537 = vpop.f32.mrf.mxu0
  %v538 = vpop.f32.mrf.mxu0
  %539 = vdwg.mxu0
  %v540 = vpack.c.bf16 %v535, %v535
  %541 = vst [vmem:[%s7] sm:$0xf] %v540
  // Predicated region
  $region30: #{image_classification_forward.1} parent=0 // pred_check
    _
  $region31: #{image_classification_forward.1} parent=0 // pred_check_branch
    %543 = sbr.rel (0) target = $region33
  $region32: #{image_classification_forward.1} parent=0 // pred_region
    _
  $region33: #{image_classification_forward.1} parent=0 // pred_fallthru
    _
  // Predicated region
  $region34: #{image_classification_forward.1} parent=0 // pred_check
    _
  $region35: #{image_classification_forward.1} parent=0 // pred_check_branch
    %545 = sbr.rel (0) target = $region37
  $region36: #{image_classification_forward.1} parent=0 // pred_region
    _
  $region37: #{image_classification_forward.1} parent=0 // pred_fallthru
    _

</llo_original>
